<compile_context>
chip_gen: v6e
topology: v6e:2x2x1
jax: 0.10.0
libtpu: 0.0.40
codegen_flags: <defaults>
</compile_context>

<pallas_src>
import functools

import jax
import jax.numpy as jnp
from jax import lax
from jax.experimental import pallas as pl
from jax.experimental.pallas import tpu as pltpu

_LANE = 128
_SUBLANE = 8


def _round_up(x, n):
    return ((x + n - 1) // n) * n


def _focal_loss_kernel(x_ref, t_ref, o_ref, *, gamma, chunk_rows, rows, rem,
                       num_tiles, mask_any, hard_targets):
    """Accumulate sum((1-pt)**gamma * BCE) for this grid step into o_ref."""
    s = pl.program_id(1)                  # sequential reduction axis
    steps = pl.num_programs(1)
    b = pl.program_id(0) * steps + s      # global row-block index
    tile_rows = x_ref.shape[0]
    n_chunks = tile_rows // chunk_rows    # static (wrapper guarantees exact)

    # o_ref is the resident (8, 128) accumulator block for this parallel index.
    @pl.when(s == 0)
    def _():
        o_ref[...] = jnp.zeros_like(o_ref)

    def focal(x, t):
        # Numerically-stable BCE-with-logits (same formulation as torch):
        #   bce = max(x, 0) - x*t + log1p(exp(-|x|))
        x = x.astype(jnp.float32)
        t = t.astype(jnp.float32)
        e = jnp.exp(-jnp.abs(x))                              # EUP
        bce = jnp.maximum(x, 0.0) - x * t + jnp.log1p(e)      # EUP (log1p)
        if hard_targets:
            # Valid only for hard {0,1} targets:
            #   pt = sigmoid(x) if t==1 else 1 - sigmoid(x)
            # Replaces the exp(-bce) transcendental with a cheap approx recip.
            inv = pl.reciprocal(1.0 + e, approx=True)
            pos = x >= 0.0
            sig = jnp.where(pos, inv, e * inv)                # sigmoid(x)
            one_m_sig = jnp.where(pos, e * inv, inv)          # 1 - sigmoid(x)
            pt = jnp.where(t > 0.5, sig, one_m_sig)
        else:
            pt = jnp.exp(-bce)                                # EUP
        omp = 1.0 - pt
        # Static gamma specialization (trace time).
        if gamma == 2:
            fw = omp * omp                                    # common default
        elif float(gamma) == int(gamma) and int(gamma) >= 0:
            fw = lax.integer_pow(omp, int(gamma))
        else:
            fw = omp ** float(gamma)                          # fractional
        # alpha and 1/N are applied once to the final scalar in the wrapper.
        return fw * bce

    def vreg_sum(v):
        # (chunk_rows, 128) -> (8, 128): pure VPU adds across stacked vregs.
        return v.reshape(-1, _SUBLANE, _LANE).sum(axis=0)

    def chunk(c):
        r0 = c * chunk_rows
        if not isinstance(r0, int):
            r0 = pl.multiple_of(r0, chunk_rows)
        return x_ref[pl.ds(r0, chunk_rows), :], t_ref[pl.ds(r0, chunk_rows), :], r0

    def body_plain(c, acc):
        x, t, _ = chunk(c)
        return acc + vreg_sum(focal(x, t))

    def body_masked(c, acc):
        # Row-space mask (no *128 flat index => no int32 overflow for huge N).
        x, t, r0 = chunk(c)
        fl = focal(x, t)
        grow = b * tile_rows + r0 + lax.broadcasted_iota(jnp.int32, fl.shape, 0)
        if rem == 0:
            valid = grow < rows
        else:
            lane = lax.broadcasted_iota(jnp.int32, fl.shape, 1)
            valid = (grow < rows - 1) | ((grow == rows - 1) & (lane < rem))
        # Keep the select (NOT a multiply-by-0): the ragged region holds
        # undefined data and `fl` there may be inf/nan.
        return acc + vreg_sum(jnp.where(valid, fl, 0.0))

    def run(body):
        zero = jnp.zeros((_SUBLANE, _LANE), jnp.float32)
        if n_chunks == 1:
            return body(0, zero)              # static slice offsets
        return lax.fori_loop(0, n_chunks, body, zero, unroll=True)

    if not mask_any:
        o_ref[...] += run(body_plain)
    else:
        # Only the final (ragged / partially padded) row-block pays for the
        # iota + compare + select; every other block takes the plain path.
        @pl.when(b < num_tiles - 1)
        def _():
            o_ref[...] += run(body_plain)

        @pl.when(b >= num_tiles - 1)
        def _():
            o_ref[...] += run(body_masked)


def binary_focal_loss(inputs, targets, alpha=0.25, gamma=2, *,
                      tile_rows=4096, chunk_rows=512, num_parallel=1,
                      hard_targets=False):
    """Pallas TPU implementation of BinaryFocalLoss.forward (mean reduction).

    num_parallel: keep 1 on single-TensorCore chips (v5e/v6e); set 2 on v7x to
      shard row-blocks across both TensorCores via CORE_PARALLEL semantics.
    hard_targets: opt-in fast path, valid only when targets are exactly {0,1}.
    """
    assert inputs.shape == targets.shape
    total_n = int(inputs.size)
    assert total_n > 0

    itemsize = max(jnp.dtype(inputs.dtype).itemsize,
                   jnp.dtype(targets.dtype).itemsize)

    # Flatten.  NOTE: free for contiguous row-major arrays; non-contiguous
    # views (e.g. transposes) incur one XLA copy here.
    x_flat = jnp.ravel(inputs)
    t_flat = jnp.ravel(targets)

    rem = total_n % _LANE
    rows = pl.cdiv(total_n, _LANE)
    if rem:
        # Pad only the <128-element tail so the slab reshapes to (rows, 128).
        # Row raggedness vs. tile_rows is handled by Pallas' ragged last block
        # plus the in-kernel mask -- no rounding to tile/grid granularity.
        # TODO(synk): jnp.pad still materializes a padded copy of both inputs;
        # sizes that are already a multiple of 128 take the zero-copy path.
        x_flat = jnp.pad(x_flat, (0, _LANE - rem))
        t_flat = jnp.pad(t_flat, (0, _LANE - rem))
    x2 = x_flat.reshape(rows, _LANE)
    t2 = t_flat.reshape(rows, _LANE)

    # Tile geometry: 1-2 MiB blocks amortize the ~0.35us/step grid overhead,
    # but keep (2 inputs x 2 pipeline buffers) <= 8 MiB so we fit under every
    # chip's scoped-VMEM default (v5e 16 MiB; v6e/v7x 32 MiB; v7x has only
    # 64 MiB physical VMEM per TC, so don't size against v6e's 128 MiB).
    vmem_budget = 8 * 1024 * 1024
    max_tile_rows = max(
        _SUBLANE,
        (vmem_budget // (2 * 2 * _LANE * itemsize)) // _SUBLANE * _SUBLANE)
    tile_rows = max(_SUBLANE, min(int(tile_rows), max_tile_rows))
    tile_rows = _round_up(min(tile_rows, _round_up(rows, _SUBLANE)), _SUBLANE)
    chunk_rows = max(_SUBLANE,
                     _round_up(min(int(chunk_rows), tile_rows), _SUBLANE))
    tile_rows = _round_up(tile_rows, chunk_rows)   # sub-chunks divide evenly

    num_tiles = pl.cdiv(rows, tile_rows)
    p_dim = max(1, min(int(num_parallel), num_tiles))
    steps = pl.cdiv(num_tiles, p_dim)

    mask_any = (rem != 0) or (rows % tile_rows != 0) or (p_dim * steps != num_tiles)

    kernel = functools.partial(
        _focal_loss_kernel, gamma=gamma, chunk_rows=chunk_rows, rows=rows,
        rem=rem, num_tiles=num_tiles, mask_any=mask_any,
        hard_targets=hard_targets)

    if p_dim > 1:
        # Only CORE_PARALLEL actually shards a grid axis across TensorCores;
        # the string "parallel" barely changes codegen.  Use on v7x only.
        dim_sem = (pltpu.CORE_PARALLEL, pltpu.ARBITRARY)
    else:
        dim_sem = ("arbitrary", "arbitrary")

    partials = pl.pallas_call(
        kernel,
        out_shape=jax.ShapeDtypeStruct((p_dim * _SUBLANE, _LANE), jnp.float32),
        grid_spec=pltpu.PrefetchScalarGridSpec(
            num_scalar_prefetch=0,
            grid=(p_dim, steps),
            in_specs=[
                pl.BlockSpec((tile_rows, _LANE), lambda p, s: (p * steps + s, 0)),
                pl.BlockSpec((tile_rows, _LANE), lambda p, s: (p * steps + s, 0)),
            ],
            # One resident (8,128) accumulator block per parallel index.
            out_specs=pl.BlockSpec((_SUBLANE, _LANE), lambda p, s: (p, 0)),
        ),
        compiler_params=pltpu.CompilerParams(
            dimension_semantics=dim_sem,
            # Footprint is ~9 MiB; set the limit explicitly so the choice is
            # deliberate on every generation (well under v7x's 64 MiB VMEM).
            vmem_limit_bytes=32 * 1024 * 1024,
        ),
    )(x2, t2)

    # Tiny finalize in XLA: sum the per-core (8,128) partials, fold alpha & 1/N.
    return jnp.sum(partials) * (float(alpha) / float(total_n))


def _reference_focal_loss(inputs, targets, alpha=0.25, gamma=2):
    x = jnp.asarray(inputs, jnp.float32)
    t = jnp.asarray(targets, jnp.float32)
    bce = jnp.maximum(x, 0.0) - x * t + jnp.log1p(jnp.exp(-jnp.abs(x)))
    pt = jnp.exp(-bce)
    return jnp.mean(alpha * (1.0 - pt) ** gamma * bce)


if __name__ == "__main__":
    key = jax.random.PRNGKey(0)
    ks = jax.random.split(key, 10)

    # Case 1: size NOT a multiple of 128 -> tail pad + pl.when-gated edge mask.
    x1 = jax.random.normal(ks[0], (8, 37), dtype=jnp.float32) * 2.0
    t1 = (jax.random.uniform(ks[1], (8, 37)) > 0.5).astype(jnp.float32)
    out1 = jax.block_until_ready(binary_focal_loss(x1, t1))
    ref1 = _reference_focal_loss(x1, t1)
    assert jnp.allclose(out1, ref1, rtol=1e-5, atol=1e-6), (out1, ref1)

    # Case 2: multi-tile grid + multi-chunk inner loop, no masking anywhere
    # (tile_rows=16, chunk_rows=8 -> 4 grid steps, 2 sub-chunks per step).
    x2 = jax.random.normal(ks[2], (64, 128), dtype=jnp.float32) * 2.0
    t2 = (jax.random.uniform(ks[3], (64, 128)) > 0.5).astype(jnp.float32)
    out2 = jax.block_until_ready(
        binary_focal_loss(x2, t2, tile_rows=16, chunk_rows=8))
    ref2 = _reference_focal_loss(x2, t2)
    assert jnp.allclose(out2, ref2, rtol=1e-5, atol=1e-6), (out2, ref2)

    # Case 3: ragged row count AND partial last row, gamma=3 (integer_pow);
    # exercises the ragged-last-block read + in-kernel row/lane mask.
    x3 = jax.random.normal(ks[4], (100, 130), dtype=jnp.float32) * 2.0
    t3 = (jax.random.uniform(ks[5], (100, 130)) > 0.5).astype(jnp.float32)
    out3 = jax.block_until_ready(
        binary_focal_loss(x3, t3, gamma=3, tile_rows=16, chunk_rows=8))
    ref3 = _reference_focal_loss(x3, t3, gamma=3)
    assert jnp.allclose(out3, ref3, rtol=1e-5, atol=1e-6), (out3, ref3)

    # Case 4: bf16 inputs streamed natively (f32 cast happens in-kernel).
    x4 = (jax.random.normal(ks[6], (16, 256), dtype=jnp.float32) * 2.0
          ).astype(jnp.bfloat16)
    t4 = (jax.random.uniform(ks[7], (16, 256)) > 0.5).astype(jnp.bfloat16)
    out4 = jax.block_until_ready(binary_focal_loss(x4, t4))
    ref4 = _reference_focal_loss(x4, t4)
    assert jnp.allclose(out4, ref4, rtol=1e-5, atol=1e-6), (out4, ref4)

    # Case 5: hard-target fast path (drops one EUP transcendental; uses the
    # approximate reciprocal, hence the looser tolerance).
    x5 = jax.random.normal(ks[8], (16, 128), dtype=jnp.float32) * 2.0
    t5 = (jax.random.uniform(ks[9], (16, 128)) > 0.5).astype(jnp.float32)
    out5 = jax.block_until_ready(binary_focal_loss(x5, t5, hard_targets=True))
    ref5 = _reference_focal_loss(x5, t5)
    assert jnp.allclose(out5, ref5, rtol=2e-2, atol=1e-4), (out5, ref5)

    print("KERNEL_OK")
</pallas_src>

<mosaic_0001>
module attributes {stable_mosaic.version = 11 : i64} {
  func.func @_focal_loss_kernel(%arg0: i32, %arg1: i32, %arg2: memref<8x128xf32, #tpu.memory_space<vmem>>, %arg3: memref<8x128xf32, #tpu.memory_space<vmem>>, %arg4: memref<8x128xf32, #tpu.memory_space<vmem>>) attributes {dimension_semantics = [#tpu.dimension_semantics<arbitrary>, #tpu.dimension_semantics<arbitrary>], iteration_bounds = array<i64: 1, 1>, scalar_prefetch = 0 : i64, scratch_operands = 0 : i64, tpu.core_type = #tpu.core_type<tc>, window_params = [{transform_indices = @transform_0, window_bounds = array<i64: 8, 128>}, {transform_indices = @transform_1, window_bounds = array<i64: 8, 128>}, {transform_indices = @transform_2, window_bounds = array<i64: 8, 128>}]} {
    %c1_i32 = arith.constant 1 : i32
    %0 = arith.muli %arg0, %c1_i32 : i32
    %1 = arith.addi %0, %arg1 : i32
    %c0_i32 = arith.constant 0 : i32
    %2 = arith.cmpi eq, %arg1, %c0_i32 : i32
    %3 = arith.extui %2 : i1 to i32
    %c0_i32_0 = arith.constant 0 : i32
    %4 = arith.cmpi ne, %3, %c0_i32_0 : i32
    scf.if %4 {
      %cst = arith.constant 0.000000e+00 : f32
      %11 = vector.broadcast %cst : f32 to vector<8x128xf32>
      %c0 = arith.constant 0 : index
      %c0_5 = arith.constant 0 : index
      %12 = vector.load %arg4[%c0, %c0_5] : memref<8x128xf32, #tpu.memory_space<vmem>>, vector<8x128xf32>
      tpu.vector_store %arg4[%c0, %c0_5], %11 {strides = array<i32>} : memref<8x128xf32, #tpu.memory_space<vmem>>, vector<8x128xf32>,
    } else {
    }
    %c0_i32_1 = arith.constant 0 : i32
    %5 = arith.cmpi slt, %1, %c0_i32_1 : i32
    %6 = arith.extui %5 : i1 to i32
    %c0_i32_2 = arith.constant 0 : i32
    %7 = arith.cmpi ne, %6, %c0_i32_2 : i32
    scf.if %7 {
      %c0 = arith.constant 0 : index
      %c0_5 = arith.constant 0 : index
      %11 = vector.load %arg4[%c0, %c0_5] : memref<8x128xf32, #tpu.memory_space<vmem>>, vector<8x128xf32>
      %cst = arith.constant 0.000000e+00 : f32
      %12 = vector.broadcast %cst : f32 to vector<8x128xf32>
      %c0_6 = arith.constant 0 : index
      %c0_7 = arith.constant 0 : index
      %13 = vector.load %arg2[%c0_6, %c0_7] : memref<8x128xf32, #tpu.memory_space<vmem>>, vector<8x128xf32>
      %c0_8 = arith.constant 0 : index
      %c0_9 = arith.constant 0 : index
      %14 = vector.load %arg3[%c0_8, %c0_9] : memref<8x128xf32, #tpu.memory_space<vmem>>, vector<8x128xf32>
      %15 = math.absf %13 : vector<8x128xf32>
      %cst_10 = arith.constant 0.000000e+00 : f32
      %16 = vector.broadcast %cst_10 : f32 to vector<8x128xf32>
      %17 = arith.subf %16, %15 : vector<8x128xf32>
      %18 = math.exp %17 : vector<8x128xf32>
      %cst_11 = arith.constant 0.000000e+00 : f32
      %19 = vector.broadcast %cst_11 : f32 to vector<8x128xf32>
      %20 = arith.maximumf %13, %19 : vector<8x128xf32>
      %21 = arith.mulf %13, %14 : vector<8x128xf32>
      %22 = arith.subf %20, %21 : vector<8x128xf32>
      %23 = math.log1p %18 : vector<8x128xf32>
      %24 = arith.addf %22, %23 : vector<8x128xf32>
      %cst_12 = arith.constant 0.000000e+00 : f32
      %25 = vector.broadcast %cst_12 : f32 to vector<8x128xf32>
      %26 = arith.subf %25, %24 : vector<8x128xf32>
      %27 = math.exp %26 : vector<8x128xf32>
      %cst_13 = arith.constant 1.000000e+00 : f32
      %28 = vector.broadcast %cst_13 : f32 to vector<8x128xf32>
      %29 = arith.subf %28, %27 : vector<8x128xf32>
      %30 = arith.mulf %29, %29 : vector<8x128xf32>
      %31 = arith.mulf %30, %24 : vector<8x128xf32>
      %32 = vector.shape_cast %31 : vector<8x128xf32> to vector<1x8x128xf32>
      %cst_14 = arith.constant dense<0.000000e+00> : vector<8x128xf32>
      %33 = vector.multi_reduction <add>, %32, %cst_14 [0] : vector<1x8x128xf32> to vector<8x128xf32>
      %34 = arith.addf %12, %33 : vector<8x128xf32>
      %35 = arith.addf %11, %34 : vector<8x128xf32>
      %c0_15 = arith.constant 0 : index
      %c0_16 = arith.constant 0 : index
      %36 = vector.load %arg4[%c0_15, %c0_16] : memref<8x128xf32, #tpu.memory_space<vmem>>, vector<8x128xf32>
      tpu.vector_store %arg4[%c0_15, %c0_16], %35 {strides = array<i32>} : memref<8x128xf32, #tpu.memory_space<vmem>>, vector<8x128xf32>,
    } else {
    }
    %c0_i32_3 = arith.constant 0 : i32
    %8 = arith.cmpi sge, %1, %c0_i32_3 : i32
    %9 = arith.extui %8 : i1 to i32
    %c0_i32_4 = arith.constant 0 : i32
    %10 = arith.cmpi ne, %9, %c0_i32_4 : i32
    scf.if %10 {
      %c0 = arith.constant 0 : index
      %c0_5 = arith.constant 0 : index
      %11 = vector.load %arg4[%c0, %c0_5] : memref<8x128xf32, #tpu.memory_space<vmem>>, vector<8x128xf32>
      %cst = arith.constant 0.000000e+00 : f32
      %12 = vector.broadcast %cst : f32 to vector<8x128xf32>
      %c0_6 = arith.constant 0 : index
      %c0_7 = arith.constant 0 : index
      %13 = vector.load %arg2[%c0_6, %c0_7] : memref<8x128xf32, #tpu.memory_space<vmem>>, vector<8x128xf32>
      %c0_8 = arith.constant 0 : index
      %c0_9 = arith.constant 0 : index
      %14 = vector.load %arg3[%c0_8, %c0_9] : memref<8x128xf32, #tpu.memory_space<vmem>>, vector<8x128xf32>
      %15 = math.absf %13 : vector<8x128xf32>
      %cst_10 = arith.constant 0.000000e+00 : f32
      %16 = vector.broadcast %cst_10 : f32 to vector<8x128xf32>
      %17 = arith.subf %16, %15 : vector<8x128xf32>
      %18 = math.exp %17 : vector<8x128xf32>
      %cst_11 = arith.constant 0.000000e+00 : f32
      %19 = vector.broadcast %cst_11 : f32 to vector<8x128xf32>
      %20 = arith.maximumf %13, %19 : vector<8x128xf32>
      %21 = arith.mulf %13, %14 : vector<8x128xf32>
      %22 = arith.subf %20, %21 : vector<8x128xf32>
      %23 = math.log1p %18 : vector<8x128xf32>
      %24 = arith.addf %22, %23 : vector<8x128xf32>
      %cst_12 = arith.constant 0.000000e+00 : f32
      %25 = vector.broadcast %cst_12 : f32 to vector<8x128xf32>
      %26 = arith.subf %25, %24 : vector<8x128xf32>
      %27 = math.exp %26 : vector<8x128xf32>
      %cst_13 = arith.constant 1.000000e+00 : f32
      %28 = vector.broadcast %cst_13 : f32 to vector<8x128xf32>
      %29 = arith.subf %28, %27 : vector<8x128xf32>
      %30 = arith.mulf %29, %29 : vector<8x128xf32>
      %31 = arith.mulf %30, %24 : vector<8x128xf32>
      %c8_i32 = arith.constant 8 : i32
      %32 = arith.muli %1, %c8_i32 : i32
      %c0_i32_14 = arith.constant 0 : i32
      %33 = arith.addi %32, %c0_i32_14 : i32
      %34 = tpu.iota {dimensions = array<i32: 0>} : vector<8x128xi32>
      %35 = vector.broadcast %33 : i32 to vector<8x128xi32>
      %36 = arith.addi %35, %34 : vector<8x128xi32>
      %37 = tpu.iota {dimensions = array<i32: 1>} : vector<8x128xi32>
      %c2_i32 = arith.constant 2 : i32
      %38 = vector.broadcast %c2_i32 : i32 to vector<8x128xi32>
      %39 = arith.cmpi slt, %36, %38 : vector<8x128xi32>
      %c2_i32_15 = arith.constant 2 : i32
      %40 = vector.broadcast %c2_i32_15 : i32 to vector<8x128xi32>
      %41 = arith.cmpi eq, %36, %40 : vector<8x128xi32>
      %c40_i32 = arith.constant 40 : i32
      %42 = vector.broadcast %c40_i32 : i32 to vector<8x128xi32>
      %43 = arith.cmpi slt, %37, %42 : vector<8x128xi32>
      %44 = arith.andi %41, %43 : vector<8x128xi1>
      %45 = arith.ori %39, %44 : vector<8x128xi1>
      %cst_16 = arith.constant 0.000000e+00 : f32
      %46 = vector.broadcast %cst_16 : f32 to vector<8x128xf32>
      %47 = arith.select %45, %31, %46 : vector<8x128xi1>, vector<8x128xf32>
      %48 = vector.shape_cast %47 : vector<8x128xf32> to vector<1x8x128xf32>
      %cst_17 = arith.constant dense<0.000000e+00> : vector<8x128xf32>
      %49 = vector.multi_reduction <add>, %48, %cst_17 [0] : vector<1x8x128xf32> to vector<8x128xf32>
      %50 = arith.addf %12, %49 : vector<8x128xf32>
      %51 = arith.addf %11, %50 : vector<8x128xf32>
      %c0_18 = arith.constant 0 : index
      %c0_19 = arith.constant 0 : index
      %52 = vector.load %arg4[%c0_18, %c0_19] : memref<8x128xf32, #tpu.memory_space<vmem>>, vector<8x128xf32>
      tpu.vector_store %arg4[%c0_18, %c0_19], %51 {strides = array<i32>} : memref<8x128xf32, #tpu.memory_space<vmem>>, vector<8x128xf32>,
    } else {
    }
    return
  }
  func.func @transform_0(%arg0: i32, %arg1: i32) -> (i32, i32) {
    %c1_i32 = arith.constant 1 : i32
    %0 = arith.muli %arg0, %c1_i32 : i32
    %1 = arith.addi %0, %arg1 : i32
    %c0_i32 = arith.constant 0 : i32
    %c0_i32_0 = arith.constant 0 : i32
    return %1, %c0_i32 : i32, i32
  }
  func.func @transform_1(%arg0: i32, %arg1: i32) -> (i32, i32) {
    %c1_i32 = arith.constant 1 : i32
    %0 = arith.muli %arg0, %c1_i32 : i32
    %1 = arith.addi %0, %arg1 : i32
    %c0_i32 = arith.constant 0 : i32
    %c0_i32_0 = arith.constant 0 : i32
    return %1, %c0_i32 : i32, i32
  }
  func.func @transform_2(%arg0: i32, %arg1: i32) -> (i32, i32) {
    %c0_i32 = arith.constant 0 : i32
    %c0_i32_0 = arith.constant 0 : i32
    return %arg0, %c0_i32 : i32, i32
  }
}

</mosaic_0001>

<llo_original>
// kernel: tpu_custom_call.1
$region0: #{tpu_custom_call.1}
  #allocation0 [shape = 'u32[]', space=smem, size = 0x4, offset = 0x4, fixed_abs, tag = 'smem constant byte address 0x4 - core index']
  #allocation1 [shape = 'u32[144,128]{1,0:T(1,128)}', space=vmem, size = 0x12000, scoped, tag = 'internal scratch']
  %s0 = inlined_call_operand.hbm [shape: f32[3,128], index: 0, kind: input, shape index: {}]
  %s1 = inlined_call_operand.hbm [shape: f32[3,128], index: 1, kind: input, shape index: {}]
  %s2 = inlined_call_operand.hbm [shape: f32[8,128], index: 2, kind: output, shape index: {}]
  %s3 = sld [smem:[#allocation0]]
  $region38: #{tpu_custom_call.1} parent=0
    _
  %s5 = ssub.s32 1, %s3
  %s6 = scalar_select 0, %s5, %s3
  $region1: #{tpu_custom_call.1} parent=0
    #allocation2 [shape = 'u8[4096]{0}', space=vmem, size = 0x1000, scoped, tag = 'input window, operand 0, single buffered']
    #allocation3 [shape = 's32[1]{0}', space=sflag, size = 0x4, scoped, tag = 'scoped memory for tpu_custom_call.1']
    #allocation4 [shape = 's32[1]{0}', space=sflag, size = 0x4, scoped, tag = 'scoped memory for tpu_custom_call.1']
    #allocation5 [shape = 'u8[4096]{0}', space=vmem, size = 0x1000, scoped, tag = 'input window, operand 1, single buffered']
    #allocation6 [shape = 's32[1]{0}', space=sflag, size = 0x4, scoped, tag = 'scoped memory for tpu_custom_call.1']
    #allocation7 [shape = 'u8[4096]{0}', space=vmem, size = 0x1000, scoped, tag = 'output window, operand 0, single buffered']
    %7 = vsyncpa [#allocation3], 0
    %8 = vsyncpa [#allocation6], 0
    %9 = vsyncpa [#allocation4], 0
    // Predicated region
    $region2: #{tpu_custom_call.1} parent=1 // pred_check
      _
    $region3: #{tpu_custom_call.1} parent=1 // pred_check_branch
      %11 = sbr.rel (0) target = $region5
    $region4: #{tpu_custom_call.1} parent=1 // pred_region
      %s12 = sadd.s32 0, 0
      %s13 = smul.u32 2, %s12
      %s14 = ssub.s32 1, %s13
      %s15 = smul.u32 64, %s14
      %s17 = ssub.s32 128, %s15
      %18 = vsyncadd [#allocation3], %s17
      %p19 = scmp.ne.s32.totalorder 0, %s15
      %s20 = smul.addr %s13, 64
      %s21 = scalar_lea.hbm %s0, %s20
      %s22 = smul.u32 4, %s14
      %s23 = sshll.u32 [#allocation2], 4
      %s24 = int_to_ptr.vmem [resolvable:$true] %s23
      %s25 = sshll.u32 %s22, 4
      %29 = dma.hbm_to_vmem [thread:$0]  (%p19), %s21, %s25, %s24, [#allocation3], 64, 64, 4
    $region5: #{tpu_custom_call.1} parent=1 // pred_fallthru
      _
    // Predicated region
    $region6: #{tpu_custom_call.1} parent=1 // pred_check
      _
    $region7: #{tpu_custom_call.1} parent=1 // pred_check_branch
      %31 = sbr.rel (0) target = $region9
    $region8: #{tpu_custom_call.1} parent=1 // pred_region
      %s32 = sadd.s32 0, 0
      %s33 = smul.u32 2, %s32
      %s34 = ssub.s32 1, %s33
      %s35 = smul.u32 64, %s34
      %s37 = ssub.s32 128, %s35
      %38 = vsyncadd [#allocation6], %s37
      %p39 = scmp.ne.s32.totalorder 0, %s35
      %s40 = smul.addr %s33, 64
      %s41 = scalar_lea.hbm %s1, %s40
      %s42 = smul.u32 4, %s34
      %s43 = sshll.u32 [#allocation5], 4
      %s44 = int_to_ptr.vmem [resolvable:$true] %s43
      %s45 = sshll.u32 %s42, 4
      %49 = dma.hbm_to_vmem [thread:$0]  (%p39), %s41, %s45, %s44, [#allocation6], 64, 64, 4
    $region9: #{tpu_custom_call.1} parent=1 // pred_fallthru
      _
    // Predicated region
    $region10: #{tpu_custom_call.1} parent=1 // pred_check
      _
    $region11: #{tpu_custom_call.1} parent=1 // pred_check_branch
      %51 = sbr.rel (0) target = $region13
    $region12: #{tpu_custom_call.1} parent=1 // pred_region
      %52 = dma.done [#allocation3], 128
    $region13: #{tpu_custom_call.1} parent=1 // pred_fallthru
      _
    // Predicated region
    $region14: #{tpu_custom_call.1} parent=1 // pred_check
      _
    $region15: #{tpu_custom_call.1} parent=1 // pred_check_branch
      %54 = sbr.rel (0) target = $region17
    $region16: #{tpu_custom_call.1} parent=1 // pred_region
      %55 = dma.done [#allocation6], 128
    $region17: #{tpu_custom_call.1} parent=1 // pred_fallthru
      _
    %s56 = sadd.s32 0, 0
    %s57 = smul.u32 2, %s56
    %s58 = ssub.s32 1, %s57
    %s59 = smul.u32 64, %s58
    %s60 = sadd.s32 0, 0
    %s61 = smul.u32 2, %s60
    %s62 = ssub.s32 1, %s61
    %s63 = smul.u32 64, %s62
    %s64 = sadd.s32 0, 0
    %p65 = scmp.eq.s32.totalorder 0, 0
    // Predicated region
    $region18: #{tpu_custom_call.1} parent=1 // pred_check
      %p66 = pneg %p65
    $region19: #{tpu_custom_call.1} parent=1 // pred_check_branch
      %68 = sbr.rel (%p66) target = $region21
    $region20: #{tpu_custom_call.1} parent=1 // pred_region
      %69 = vst [vmem:[#allocation7] sm:$0xff] 0.0
    $region21: #{tpu_custom_call.1} parent=1 // pred_fallthru
      _
    %p70 = scmp.lt.s32.totalorder %s64, 0
    // Predicated region
    $region22: #{tpu_custom_call.1} parent=1 // pred_check
      %p71 = pneg %p70
    $region23: #{tpu_custom_call.1} parent=1 // pred_check_branch
      %73 = sbr.rel (%p71) target = $region25
    $region24: #{tpu_custom_call.1} parent=1 // pred_region
      %v74 = vld [vmem:[#allocation7] sm:$0xff]
      %v75 = vld [vmem:[#allocation2] sm:$0xff]
      %v76 = vld [vmem:[#allocation5] sm:$0xff]
      %v77 = vand.u32 2147483647, %v75
      %v78 = vsub.f32 0.0, %v77
      %v79 = vmul.f32 %v78, 1.442695
      %v80 = vpow.pop %v79
      %v81 = vmax.f32 %v75, 0.0
      %v82 = vmul.f32 %v75, %v76
      %v83 = vsub.f32 %v81, %v82
      %v84 = vadd.f32 %v80, 1.0
      %v85 = vlog2.pop %v84
      %v86 = vmul.f32 %v85, 0.6931472
      %v87 = vmul.f32 -0.5, %v80
      %v88 = vadd.f32 %v87, 1.0
      %v89 = vmul.f32 %v88, %v80
      %v90 = vand.u32 2147483647, %v80
      %vm91 = vcmp.lt.f32.partialorder %v90, 0.0004427343
      %v92 = vsel %vm91, %v89, %v86
      %v93 = vadd.f32 %v83, %v92
      %v94 = vsub.f32 0.0, %v93
      %v95 = vmul.f32 %v94, 1.442695
      %v96 = vpow.pop %v95
      %v97 = vsub.f32 1.0, %v96
      %v98 = vmul.f32 %v97, %v97
      %v99 = vmul.f32 %v98, %v93
      %v100 = vadd.f32 %v99, 0.0
      %v101 = vadd.f32 %v100, 0.0
      %v102 = vadd.f32 %v74, %v101
      %103 = vst [vmem:[#allocation7] sm:$0xff] %v102
    $region25: #{tpu_custom_call.1} parent=1 // pred_fallthru
      _
    %p104 = scmp.ge.s32.totalorder %s64, 0
    // Predicated region
    $region26: #{tpu_custom_call.1} parent=1 // pred_check
      %p105 = pneg %p104
    $region27: #{tpu_custom_call.1} parent=1 // pred_check_branch
      %107 = sbr.rel (%p105) target = $region29
    $region28: #{tpu_custom_call.1} parent=1 // pred_region
      %v108 = vld [vmem:[#allocation7] sm:$0xff]
      %v109 = vld [vmem:[#allocation2] sm:$0xff]
      %v110 = vld [vmem:[#allocation5] sm:$0xff]
      %v111 = vand.u32 2147483647, %v109
      %v112 = vsub.f32 0.0, %v111
      %v113 = vmul.f32 %v112, 1.442695
      %v114 = vpow.pop %v113
      %v115 = vmax.f32 %v109, 0.0
      %v116 = vmul.f32 %v109, %v110
      %v117 = vsub.f32 %v115, %v116
      %v118 = vadd.f32 %v114, 1.0
      %v119 = vlog2.pop %v118
      %v120 = vmul.f32 %v119, 0.6931472
      %v121 = vmul.f32 -0.5, %v114
      %v122 = vadd.f32 %v121, 1.0
      %v123 = vmul.f32 %v122, %v114
      %v124 = vand.u32 2147483647, %v114
      %vm125 = vcmp.lt.f32.partialorder %v124, 0.0004427343
      %v126 = vsel %vm125, %v123, %v120
      %v127 = vadd.f32 %v117, %v126
      %v128 = vsub.f32 0.0, %v127
      %v129 = vmul.f32 %v128, 1.442695
      %v130 = vpow.pop %v129
      %v131 = vsub.f32 1.0, %v130
      %v132 = vmul.f32 %v131, %v131
      %v133 = vmul.f32 %v132, %v127
      %s134 = smul.u32 %s64, 8
      %v135 = vlaneseq
      %v136 = vshrl.u32 %v135, 7
      %v137 = vstv %s134
      %v138 = vadd.s32 %v137, %v136
      %v139 = vlaneseq
      %v140 = vand.u32 %v139, 127
      %vm141 = vcmp.lt.s32.totalorder %v138, 2
      %vm142 = vcmp.eq.s32.totalorder %v138, 2
      %vm143 = vcmp.lt.s32.totalorder %v140, 40
      %vm144 = vmand %vm142, %vm143
      %vm145 = vmor %vm141, %vm144
      %v146 = vsel %vm145, %v133, 0.0
      %v147 = vadd.f32 %v146, 0.0
      %v148 = vadd.f32 %v147, 0.0
      %v149 = vadd.f32 %v108, %v148
      %150 = vst [vmem:[#allocation7] sm:$0xff] %v149
    $region29: #{tpu_custom_call.1} parent=1 // pred_fallthru
      _
    // Predicated region
    $region30: #{tpu_custom_call.1} parent=1 // pred_check
      _
    $region31: #{tpu_custom_call.1} parent=1 // pred_check_branch
      %152 = sbr.rel (0) target = $region33
    $region32: #{tpu_custom_call.1} parent=1 // pred_region
      %s154 = ssub.s32 128, 128
      %155 = vsyncadd [#allocation4], %s154
      %s157 = sshll.u32 [#allocation7], 4
      %s158 = int_to_ptr.vmem [resolvable:$true] %s157
      %160 = dma.vmem_to_hbm [thread:$0]  %s158, 128, %s2, [#allocation4]
    $region33: #{tpu_custom_call.1} parent=1 // pred_fallthru
      _
    // Predicated region
    $region34: #{tpu_custom_call.1} parent=1 // pred_check
      _
    $region35: #{tpu_custom_call.1} parent=1 // pred_check_branch
      %162 = sbr.rel (0) target = $region37
    $region36: #{tpu_custom_call.1} parent=1 // pred_region
      %163 = dma.done [#allocation4], 128
    $region37: #{tpu_custom_call.1} parent=1 // pred_fallthru
      _
    %164 = vsyncpa [#allocation3], 1
    %165 = vsyncpa [#allocation6], 1
    %166 = vsyncpa [#allocation4], 1

</llo_original>
